<compile_context>
chip_gen: v7x
topology: tpu7x:2x2x1
jax: 0.10.0
libtpu: 0.0.40
codegen_flags: <defaults>
</compile_context>

<pallas_src>
import functools

import jax
import jax.numpy as jnp
from jax.experimental import pallas as pl
from jax.experimental.pallas import tpu as pltpu

IN_EPS = 1e-5          # nn.InstanceNorm1d default eps
SOFTMAX_SHIFT = 1e-8   # the `x + 1e-08` in forward()
_LANE = 128


def _round_up(a, b):
    return (a + b - 1) // b * b


def _budgets():
    """(tile_cap_lanes, vmem_limit_bytes), generation aware.

    v5e/v6e have 128 MiB of VMEM per TensorCore, v7x has 64 MiB.  If the
    query is unavailable, fall back to the conservative (v7x) numbers."""
    phys = 64 << 20
    try:
        phys = int(pltpu.get_tpu_info().vmem_capacity_bytes)
    except Exception:
        pass
    if phys >= (96 << 20):           # v5e / v6e class (128 MiB physical)
        return 32768, 96 << 20
    return 16384, 48 << 20           # v7x class (64 MiB physical)


def _mlp_logits(x, w1, b1, w2, b2):
    """(3, T) lane-dense x -> (4, T) pre-softmax logits fc2(relu(IN(fc1(x)))) + 1e-8."""
    # fc1 on the VPU: K=3 is just three broadcast multiply-adds.
    h = (b1
         + w1[:, 0:1] * x[0:1, :]
         + w1[:, 1:2] * x[1:2, :]
         + w1[:, 2:3] * x[2:3, :])                               # (10, T)
    # InstanceNorm1d: per-sample (per-column) over the 10 features, biased var.
    mean = jnp.mean(h, axis=0, keepdims=True)                    # (1, T)
    cen = h - mean
    var = jnp.mean(cen * cen, axis=0, keepdims=True)
    hr = jnp.maximum(cen * jax.lax.rsqrt(var + IN_EPS), 0.0)     # ReLU, (10, T)
    # fc2 on the MXU (otherwise idle); M=4 / K=10 padding waste is irrelevant.
    logits = jnp.dot(w2, hr, preferred_element_type=jnp.float32,
                     precision=jax.lax.Precision.HIGHEST)        # (4, T)
    return logits + b2 + jnp.float32(SOFTMAX_SHIFT)


def _accurate_reciprocal(l):
    inv = pl.reciprocal(l, approx=True)       # EUP slot
    inv = inv * (2.0 - l * inv)               # two Newton steps -> f32 accurate
    return inv * (2.0 - l * inv)


def _single_pass_kernel(x_ref, w1_ref, b1_ref, w2_ref, b2_ref, out_ref, *,
                        n_valid):
    """Whole problem in one grid step: softmax over N is a lane reduction."""
    logits = _mlp_logits(x_ref[...], w1_ref[...], b1_ref[...],
                         w2_ref[...], b2_ref[...])               # (4, n_pad)
    col = jax.lax.broadcasted_iota(jnp.int32, (1, logits.shape[1]), 1)
    valid = col < n_valid                                        # (1, n_pad)
    m = jnp.max(jnp.where(valid, logits, -jnp.inf), axis=1, keepdims=True)
    e = jnp.where(valid, jnp.exp(logits - m), 0.0)
    l = jnp.sum(e, axis=1, keepdims=True)
    out_ref[...] = e * _accurate_reciprocal(l)


def _two_pass_kernel(x_ref, w1_ref, b1_ref, w2_ref, b2_ref, out_ref, *scratch,
                     n_valid, tile, cache):
    """grid = (2, num_tiles): axis 0 = softmax pass (0: per-tile logits +
    online column max / exp-sum, 1: rescale), axis 1 = N tile index."""
    if cache:
        cache_ref, m_ref, l_ref = scratch
    else:
        m_ref, l_ref = scratch
        cache_ref = None

    phase = pl.program_id(0)
    tidx = pl.program_id(1)

    @pl.when(jnp.logical_and(phase == 0, tidx == 0))
    def _init():
        m_ref[...] = jnp.full(m_ref.shape, -jnp.inf, m_ref.dtype)
        l_ref[...] = jnp.zeros(l_ref.shape, l_ref.dtype)

    @pl.when(phase == 0)
    def _accumulate():
        logits = _mlp_logits(x_ref[...], w1_ref[...], b1_ref[...],
                             w2_ref[...], b2_ref[...])           # (4, tile)
        if cache:
            cache_ref[tidx] = logits             # phase 1 reads this back
        # Every phase-0 step maps to the same output buffer, which is only
        # flushed after phase 1 has overwritten it; writing it here guarantees
        # uninitialized VMEM can never reach HBM (review correctness note).
        out_ref[...] = logits
        # Padding mask: only phase 0 needs it.
        col = tidx * tile + jax.lax.broadcasted_iota(jnp.int32, (1, tile), 1)
        valid = col < n_valid
        m_old = m_ref[...]
        m_new = jnp.maximum(
            m_old,
            jnp.max(jnp.where(valid, logits, -jnp.inf), axis=1, keepdims=True))
        e = jnp.where(valid, jnp.exp(logits - m_new), 0.0)
        l_ref[...] = (l_ref[...] * jnp.exp(m_old - m_new)
                      + jnp.sum(e, axis=1, keepdims=True))
        m_ref[...] = m_new

    @pl.when(phase == 1)
    def _rescale():
        if cache:
            logits = cache_ref[tidx]
        else:   # fallback for huge N: recompute the tile's logits
            logits = _mlp_logits(x_ref[...], w1_ref[...], b1_ref[...],
                                 w2_ref[...], b2_ref[...])
        out_ref[...] = (jnp.exp(logits - m_ref[...])
                        * _accurate_reciprocal(l_ref[...]))


def direction_net_forward(x, params, *, tile=None, cache_logits=None):
    """x: (N, 3).  params = (w1, b1, w2, b2) in PyTorch nn.Linear layout:
    w1 (10, 3), b1 (10,), w2 (4, 10), b2 (4,).  Returns (1, N, 4) float32,
    matching DirectionNet.forward().  `tile` / `cache_logits` are test hooks
    (auto-selected when None); `cache_logits` only matters on the multi-tile
    path."""
    w1, b1, w2, b2 = params
    n = int(x.shape[0])
    if n < 1:
        raise ValueError("DirectionNet forward needs at least one sample.")

    tile_cap, vmem_limit = _budgets()
    if tile is None:
        tile = min(tile_cap, _round_up(n, _LANE))
    tile = max(_LANE, _round_up(int(tile), _LANE))
    n_pad = _round_up(n, tile)
    num_tiles = n_pad // tile

    # Lane-dense layout: samples live on the 128-lane axis.  The transpose /
    # pad is one cheap XLA op (~24N B); callers reusing the same x across many
    # calls should pre-transpose once outside this wrapper.
    xf = x.astype(jnp.float32)
    if n == n_pad:
        x_t = xf.T
    else:
        x_t = jnp.zeros((3, n_pad), jnp.float32).at[:, :n].set(xf.T)

    args = (x_t,
            w1.astype(jnp.float32),                     # (10, 3)
            b1.reshape(10, 1).astype(jnp.float32),
            w2.astype(jnp.float32),                     # (4, 10)
            b2.reshape(4, 1).astype(jnp.float32))

    if num_tiles == 1:
        # ---------------- single-pass fast path ----------------
        out_t = pl.pallas_call(
            functools.partial(_single_pass_kernel, n_valid=n),
            out_shape=jax.ShapeDtypeStruct((4, n_pad), jnp.float32),
            grid_spec=pltpu.PrefetchScalarGridSpec(
                num_scalar_prefetch=0,
                grid=(1,),
                in_specs=[
                    pl.BlockSpec((3, n_pad), lambda i: (0, 0)),
                    pl.BlockSpec((10, 3), lambda i: (0, 0)),
                    pl.BlockSpec((10, 1), lambda i: (0, 0)),
                    pl.BlockSpec((4, 10), lambda i: (0, 0)),
                    pl.BlockSpec((4, 1), lambda i: (0, 0)),
                ],
                out_specs=pl.BlockSpec((4, n_pad), lambda i: (0, 0)),
            ),
            compiler_params=pltpu.CompilerParams(
                dimension_semantics=("arbitrary",),
                vmem_limit_bytes=vmem_limit),
        )(*args)
    else:
        # ---------------- multi-tile two-pass path ----------------
        # Logits cache: (num_tiles, 4->8 sublane-padded, tile) f32 = 32 B/sample.
        cache_bytes = 32 * n_pad
        step_bytes = 640 * tile            # rough per-step block + temp footprint
        if cache_logits is None:
            cache_logits = cache_bytes + step_bytes + (8 << 20) <= vmem_limit

        scratch = [pltpu.VMEM((4, 1), jnp.float32),     # running column max
                   pltpu.VMEM((4, 1), jnp.float32)]     # running exp-sum
        if cache_logits:
            scratch.insert(0, pltpu.VMEM((num_tiles, 4, tile), jnp.float32))
            x_map = lambda p, j: (0, j * (1 - p))       # phase 1 never re-reads x
        else:
            x_map = lambda p, j: (0, j)                 # recompute path streams x twice

        out_t = pl.pallas_call(
            functools.partial(_two_pass_kernel, n_valid=n, tile=tile,
                              cache=cache_logits),
            out_shape=jax.ShapeDtypeStruct((4, n_pad), jnp.float32),
            grid_spec=pltpu.PrefetchScalarGridSpec(
                num_scalar_prefetch=0,
                grid=(2, num_tiles),                     # (softmax pass, N tile)
                in_specs=[
                    pl.BlockSpec((3, tile), x_map),
                    pl.BlockSpec((10, 3), lambda p, j: (0, 0)),   # weights stay
                    pl.BlockSpec((10, 1), lambda p, j: (0, 0)),   #  resident in
                    pl.BlockSpec((4, 10), lambda p, j: (0, 0)),   #  VMEM (const
                    pl.BlockSpec((4, 1), lambda p, j: (0, 0)),    #  index maps)
                ],
                # Phase 0 steps all map to block (0, 0) (only flushed after
                # phase 1 rewrites it); phase 1 writes each block exactly once.
                out_specs=pl.BlockSpec((4, tile), lambda p, j: (0, j * p)),
                scratch_shapes=scratch,
            ),
            compiler_params=pltpu.CompilerParams(
                # TODO(synk): shard the tile axis over v7x's 2 TensorCores
                # (per-core m/l partials + combine step); both axes carry the
                # softmax accumulation today, so they stay "arbitrary".
                dimension_semantics=("arbitrary", "arbitrary"),
                vmem_limit_bytes=vmem_limit),
        )(*args)

    # Back to PyTorch's (1, N, 4).
    return out_t[:, :n].T[None, :, :]


def _reference_forward(x, params):
    """Pure-JAX reference of the PyTorch forward (for the self-check)."""
    w1, b1, w2, b2 = params
    h = x.astype(jnp.float32) @ w1.T + b1
    mean = h.mean(axis=-1, keepdims=True)
    var = ((h - mean) ** 2).mean(axis=-1, keepdims=True)
    h = jnp.maximum((h - mean) / jnp.sqrt(var + IN_EPS), 0.0)
    logits = (h @ w2.T + b2 + SOFTMAX_SHIFT)[None, :, :]    # (1, N, 4)
    return jax.nn.softmax(logits, axis=1)                   # softmax over N


if __name__ == "__main__":
    key = jax.random.PRNGKey(0)
    k_x, k_x2, k_w1, k_b1, k_w2, k_b2 = jax.random.split(key, 6)

    # PyTorch-layout params, U(-1/sqrt(fan_in), 1/sqrt(fan_in)) like nn.Linear.
    bound1 = 1.0 / float(jnp.sqrt(3.0))
    w1 = jax.random.uniform(k_w1, (10, 3), jnp.float32, -bound1, bound1)
    b1 = jax.random.uniform(k_b1, (10,), jnp.float32, -bound1, bound1)
    bound2 = 1.0 / float(jnp.sqrt(10.0))
    w2 = jax.random.uniform(k_w2, (4, 10), jnp.float32, -bound2, bound2)
    b2 = jax.random.uniform(k_b2, (4,), jnp.float32, -bound2, bound2)
    params = (w1, b1, w2, b2)

    n = 300
    x = jax.random.normal(k_x, (n, 3), dtype=jnp.float32)
    ref = _reference_forward(x, params)

    # 1) Default path: single-pass (one tile), ragged tail masked.
    out = jax.block_until_ready(direction_net_forward(x, params))
    assert out.shape == (1, n, 4), out.shape
    assert jnp.allclose(out, ref, atol=1e-5, rtol=1e-5)
    assert jnp.allclose(out.sum(axis=1), 1.0, atol=1e-5)    # softmax over N

    # 2) Multi-tile cached-logits path (forced 128-lane tiles -> 3 tiles).
    out_c = jax.block_until_ready(direction_net_forward(x, params, tile=128))
    assert jnp.allclose(out_c, ref, atol=1e-5, rtol=1e-5)

    # 3) Multi-tile recompute fallback (logits cache disabled).
    out_r = jax.block_until_ready(
        direction_net_forward(x, params, tile=128, cache_logits=False))
    assert jnp.allclose(out_r, ref, atol=1e-5, rtol=1e-5)

    # 4) Tiny N on the default single-pass path.
    n2 = 8
    x2 = jax.random.normal(k_x2, (n2, 3), dtype=jnp.float32)
    out2 = jax.block_until_ready(direction_net_forward(x2, params))
    assert out2.shape == (1, n2, 4), out2.shape
    assert jnp.allclose(out2, _reference_forward(x2, params), atol=1e-5, rtol=1e-5)

    print("KERNEL_OK")
</pallas_src>

<mosaic_0001>
module attributes {stable_mosaic.version = 11 : i64} {
  func.func @_single_pass_kernel(%arg0: i32, %arg1: memref<3x384xf32, #tpu.memory_space<vmem>>, %arg2: memref<10x3xf32, #tpu.memory_space<vmem>>, %arg3: memref<10x1xf32, #tpu.memory_space<vmem>>, %arg4: memref<4x10xf32, #tpu.memory_space<vmem>>, %arg5: memref<4x1xf32, #tpu.memory_space<vmem>>, %arg6: memref<4x384xf32, #tpu.memory_space<vmem>>) attributes {dimension_semantics = [#tpu.dimension_semantics<arbitrary>], iteration_bounds = array<i64: 1>, scalar_prefetch = 0 : i64, scratch_operands = 0 : i64, tpu.core_type = #tpu.core_type<tc>, window_params = [{pipeline_mode = #tpu.pipeline_mode<synchronous>, transform_indices = @transform_0, window_bounds = array<i64: 3, 384>}, {pipeline_mode = #tpu.pipeline_mode<synchronous>, transform_indices = @transform_1, window_bounds = array<i64: 10, 3>}, {pipeline_mode = #tpu.pipeline_mode<synchronous>, transform_indices = @transform_2, window_bounds = array<i64: 10, 1>}, {pipeline_mode = #tpu.pipeline_mode<synchronous>, transform_indices = @transform_3, window_bounds = array<i64: 4, 10>}, {pipeline_mode = #tpu.pipeline_mode<synchronous>, transform_indices = @transform_4, window_bounds = array<i64: 4, 1>}, {pipeline_mode = #tpu.pipeline_mode<synchronous>, transform_indices = @transform_5, window_bounds = array<i64: 4, 384>}]} {
    %c0 = arith.constant 0 : index
    %c0_0 = arith.constant 0 : index
    %0 = vector.load %arg1[%c0, %c0_0] : memref<3x384xf32, #tpu.memory_space<vmem>>, vector<3x384xf32>
    %c0_1 = arith.constant 0 : index
    %c0_2 = arith.constant 0 : index
    %1 = vector.load %arg2[%c0_1, %c0_2] : memref<10x3xf32, #tpu.memory_space<vmem>>, vector<10x3xf32>
    %c0_3 = arith.constant 0 : index
    %c0_4 = arith.constant 0 : index
    %2 = vector.load %arg3[%c0_3, %c0_4] : memref<10x1xf32, #tpu.memory_space<vmem>>, vector<10x1xf32>
    %c0_5 = arith.constant 0 : index
    %c0_6 = arith.constant 0 : index
    %3 = vector.load %arg4[%c0_5, %c0_6] : memref<4x10xf32, #tpu.memory_space<vmem>>, vector<4x10xf32>
    %c0_7 = arith.constant 0 : index
    %c0_8 = arith.constant 0 : index
    %4 = vector.load %arg5[%c0_7, %c0_8] : memref<4x1xf32, #tpu.memory_space<vmem>>, vector<4x1xf32>
    %5 = vector.extract_strided_slice %1 {offsets = [0, 0], sizes = [10, 1], strides = [1, 1]} : vector<10x3xf32> to vector<10x1xf32>
    %6 = vector.extract_strided_slice %0 {offsets = [0, 0], sizes = [1, 384], strides = [1, 1]} : vector<3x384xf32> to vector<1x384xf32>
    %7 = vector.broadcast %5 : vector<10x1xf32> to vector<10x384xf32>
    %8 = vector.broadcast %6 : vector<1x384xf32> to vector<10x384xf32>
    %9 = arith.mulf %7, %8 : vector<10x384xf32>
    %10 = vector.broadcast %2 : vector<10x1xf32> to vector<10x384xf32>
    %11 = arith.addf %10, %9 : vector<10x384xf32>
    %12 = vector.extract_strided_slice %1 {offsets = [0, 1], sizes = [10, 1], strides = [1, 1]} : vector<10x3xf32> to vector<10x1xf32>
    %13 = vector.extract_strided_slice %0 {offsets = [1, 0], sizes = [1, 384], strides = [1, 1]} : vector<3x384xf32> to vector<1x384xf32>
    %14 = vector.broadcast %12 : vector<10x1xf32> to vector<10x384xf32>
    %15 = vector.broadcast %13 : vector<1x384xf32> to vector<10x384xf32>
    %16 = arith.mulf %14, %15 : vector<10x384xf32>
    %17 = arith.addf %11, %16 : vector<10x384xf32>
    %18 = vector.extract_strided_slice %1 {offsets = [0, 2], sizes = [10, 1], strides = [1, 1]} : vector<10x3xf32> to vector<10x1xf32>
    %19 = vector.extract_strided_slice %0 {offsets = [2, 0], sizes = [1, 384], strides = [1, 1]} : vector<3x384xf32> to vector<1x384xf32>
    %20 = vector.broadcast %18 : vector<10x1xf32> to vector<10x384xf32>
    %21 = vector.broadcast %19 : vector<1x384xf32> to vector<10x384xf32>
    %22 = arith.mulf %20, %21 : vector<10x384xf32>
    %23 = arith.addf %17, %22 : vector<10x384xf32>
    %cst = arith.constant dense<0.000000e+00> : vector<384xf32>
    %24 = vector.multi_reduction <add>, %23, %cst [0] : vector<10x384xf32> to vector<384xf32>
    %25 = vector.shape_cast %24 : vector<384xf32> to vector<1x384xf32>
    %cst_9 = arith.constant 1.000000e+01 : f32
    %26 = vector.broadcast %cst_9 : f32 to vector<1x384xf32>
    %27 = arith.divf %25, %26 : vector<1x384xf32>
    %28 = vector.broadcast %27 : vector<1x384xf32> to vector<10x384xf32>
    %29 = arith.subf %23, %28 : vector<10x384xf32>
    %30 = arith.mulf %29, %29 : vector<10x384xf32>
    %cst_10 = arith.constant dense<0.000000e+00> : vector<384xf32>
    %31 = vector.multi_reduction <add>, %30, %cst_10 [0] : vector<10x384xf32> to vector<384xf32>
    %32 = vector.shape_cast %31 : vector<384xf32> to vector<1x384xf32>
    %cst_11 = arith.constant 1.000000e+01 : f32
    %33 = vector.broadcast %cst_11 : f32 to vector<1x384xf32>
    %34 = arith.divf %32, %33 : vector<1x384xf32>
    %cst_12 = arith.constant 9.99999974E-6 : f32
    %35 = vector.broadcast %cst_12 : f32 to vector<1x384xf32>
    %36 = arith.addf %34, %35 : vector<1x384xf32>
    %37 = math.rsqrt %36 : vector<1x384xf32>
    %38 = vector.broadcast %37 : vector<1x384xf32> to vector<10x384xf32>
    %39 = arith.mulf %29, %38 : vector<10x384xf32>
    %cst_13 = arith.constant 0.000000e+00 : f32
    %40 = vector.broadcast %cst_13 : f32 to vector<10x384xf32>
    %41 = arith.maximumf %39, %40 : vector<10x384xf32>
    %cst_14 = arith.constant dense<0.000000e+00> : vector<4x384xf32>
    %42 = tpu.matmul %3, %41, %cst_14 {dimension_numbers = #tpu.dot_dimension_numbers<[1], [0], [0], [1], [0, 0, 1, 1], [], []>, precision = #tpu.contract_precision<fp32>} : vector<4x10xf32>, vector<10x384xf32>, vector<4x384xf32> -> vector<4x384xf32>
    %43 = vector.broadcast %4 : vector<4x1xf32> to vector<4x384xf32>
    %44 = arith.addf %42, %43 : vector<4x384xf32>
    %cst_15 = arith.constant 9.99999993E-9 : f32
    %45 = vector.broadcast %cst_15 : f32 to vector<4x384xf32>
    %46 = arith.addf %44, %45 : vector<4x384xf32>
    %47 = tpu.iota {dimensions = array<i32: 1>} : vector<1x384xi32>
    %c300_i32 = arith.constant 300 : i32
    %48 = vector.broadcast %c300_i32 : i32 to vector<1x384xi32>
    %49 = arith.cmpi slt, %47, %48 : vector<1x384xi32>
    %cst_16 = arith.constant 0xFF800000 : f32
    %50 = vector.shape_cast %49 : vector<1x384xi1> to vector<1x384xi1>
    %51 = vector.broadcast %50 : vector<1x384xi1> to vector<4x384xi1>
    %52 = vector.broadcast %cst_16 : f32 to vector<4x384xf32>
    %53 = arith.select %51, %46, %52 : vector<4x384xi1>, vector<4x384xf32>
    %cst_17 = arith.constant dense<0xFF800000> : vector<4xf32>
    %54 = vector.multi_reduction <maximumf>, %53, %cst_17 [1] : vector<4x384xf32> to vector<4xf32>
    %55 = vector.shape_cast %54 : vector<4xf32> to vector<4x1xf32>
    %56 = vector.broadcast %55 : vector<4x1xf32> to vector<4x384xf32>
    %57 = arith.subf %46, %56 : vector<4x384xf32>
    %58 = math.exp %57 : vector<4x384xf32>
    %cst_18 = arith.constant 0.000000e+00 : f32
    %59 = vector.shape_cast %49 : vector<1x384xi1> to vector<1x384xi1>
    %60 = vector.broadcast %59 : vector<1x384xi1> to vector<4x384xi1>
    %61 = vector.broadcast %cst_18 : f32 to vector<4x384xf32>
    %62 = arith.select %60, %58, %61 : vector<4x384xi1>, vector<4x384xf32>
    %cst_19 = arith.constant dense<0.000000e+00> : vector<4xf32>
    %63 = vector.multi_reduction <add>, %62, %cst_19 [1] : vector<4x384xf32> to vector<4xf32>
    %64 = vector.shape_cast %63 : vector<4xf32> to vector<4x1xf32>
    %65 = tpu.reciprocal %64 {approx = true} : vector<4x1xf32> -> vector<4x1xf32>
    %66 = arith.mulf %64, %65 : vector<4x1xf32>
    %cst_20 = arith.constant 2.000000e+00 : f32
    %67 = vector.broadcast %cst_20 : f32 to vector<4x1xf32>
    %68 = arith.subf %67, %66 : vector<4x1xf32>
    %69 = arith.mulf %65, %68 : vector<4x1xf32>
    %70 = arith.mulf %64, %69 : vector<4x1xf32>
    %cst_21 = arith.constant 2.000000e+00 : f32
    %71 = vector.broadcast %cst_21 : f32 to vector<4x1xf32>
    %72 = arith.subf %71, %70 : vector<4x1xf32>
    %73 = arith.mulf %69, %72 : vector<4x1xf32>
    %74 = vector.broadcast %73 : vector<4x1xf32> to vector<4x384xf32>
    %75 = arith.mulf %62, %74 : vector<4x384xf32>
    %c0_22 = arith.constant 0 : index
    %c0_23 = arith.constant 0 : index
    %76 = vector.load %arg6[%c0_22, %c0_23] : memref<4x384xf32, #tpu.memory_space<vmem>>, vector<4x384xf32>
    tpu.vector_store %arg6[%c0_22, %c0_23], %75 {strides = array<i32>} : memref<4x384xf32, #tpu.memory_space<vmem>>, vector<4x384xf32>,
    return
  }
  func.func @transform_0(%arg0: i32) -> (i32, i32) {
    %c0_i32 = arith.constant 0 : i32
    %c0_i32_0 = arith.constant 0 : i32
    %c0_i32_1 = arith.constant 0 : i32
    return %c0_i32, %c0_i32_0 : i32, i32
  }
  func.func @transform_1(%arg0: i32) -> (i32, i32) {
    %c0_i32 = arith.constant 0 : i32
    %c0_i32_0 = arith.constant 0 : i32
    %c0_i32_1 = arith.constant 0 : i32
    return %c0_i32, %c0_i32_0 : i32, i32
  }
  func.func @transform_2(%arg0: i32) -> (i32, i32) {
    %c0_i32 = arith.constant 0 : i32
    %c0_i32_0 = arith.constant 0 : i32
    %c0_i32_1 = arith.constant 0 : i32
    return %c0_i32, %c0_i32_0 : i32, i32
  }
  func.func @transform_3(%arg0: i32) -> (i32, i32) {
    %c0_i32 = arith.constant 0 : i32
    %c0_i32_0 = arith.constant 0 : i32
    %c0_i32_1 = arith.constant 0 : i32
    return %c0_i32, %c0_i32_0 : i32, i32
  }
  func.func @transform_4(%arg0: i32) -> (i32, i32) {
    %c0_i32 = arith.constant 0 : i32
    %c0_i32_0 = arith.constant 0 : i32
    %c0_i32_1 = arith.constant 0 : i32
    return %c0_i32, %c0_i32_0 : i32, i32
  }
  func.func @transform_5(%arg0: i32) -> (i32, i32) {
    %c0_i32 = arith.constant 0 : i32
    %c0_i32_0 = arith.constant 0 : i32
    %c0_i32_1 = arith.constant 0 : i32
    return %c0_i32, %c0_i32_0 : i32, i32
  }
}

</mosaic_0001>

<llo_original>
// kernel: tpu_custom_call.1
$region0: #{tpu_custom_call.1}
  #allocation0 [shape = 'u32[]', space=smem, size = 0x4, offset = 0x4, fixed_abs, tag = 'smem constant byte address 0x4 - core index']
  #allocation1 [shape = 'u32[144,128]{1,0:T(1,128)}', space=vmem, size = 0x12000, scoped, tag = 'internal scratch']
  %s0 = inlined_call_operand.vmem [shape: f32[3,384], index: 0, kind: input, shape index: {}]
  %s1 = inlined_call_operand.vmem [shape: f32[10,3], index: 1, kind: input, shape index: {}]
  %s2 = inlined_call_operand.vmem [shape: f32[10,1], index: 2, kind: input, shape index: {}]
  %s3 = inlined_call_operand.vmem [shape: f32[4,10], index: 3, kind: input, shape index: {}]
  %s4 = inlined_call_operand.vmem [shape: f32[4,1], index: 4, kind: input, shape index: {}]
  %s5 = inlined_call_operand.hbm [shape: f32[4,384], index: 5, kind: output, shape index: {}]
  %s6 = sld [smem:[#allocation0]]
  $region30: #{tpu_custom_call.1} parent=0
    _
  %s8 = ssub.s32 1, %s6
  %s9 = scalar_select 0, %s8, %s6
  $region1: #{tpu_custom_call.1} parent=0
    #allocation2 [shape = 'u8[6144]{0}', space=vmem, size = 0x1800, scoped, tag = 'output window, operand 0, single buffered']
    #allocation3 [shape = 's32[1]{0}', space=sflag, size = 0x4, scoped, tag = 'scoped memory for tpu_custom_call.1']
    %10 = vsyncpa [#allocation3], 0
    // Predicated region
    $region2: #{tpu_custom_call.1} parent=1 // pred_check
      _
    $region3: #{tpu_custom_call.1} parent=1 // pred_check_branch
      %12 = sbr.rel (0) target = $region5
    $region4: #{tpu_custom_call.1} parent=1 // pred_region
      _
    $region5: #{tpu_custom_call.1} parent=1 // pred_fallthru
      _
    // Predicated region
    $region6: #{tpu_custom_call.1} parent=1 // pred_check
      _
    $region7: #{tpu_custom_call.1} parent=1 // pred_check_branch
      %14 = sbr.rel (0) target = $region9
    $region8: #{tpu_custom_call.1} parent=1 // pred_region
      _
    $region9: #{tpu_custom_call.1} parent=1 // pred_fallthru
      _
    // Predicated region
    $region10: #{tpu_custom_call.1} parent=1 // pred_check
      _
    $region11: #{tpu_custom_call.1} parent=1 // pred_check_branch
      %16 = sbr.rel (0) target = $region13
    $region12: #{tpu_custom_call.1} parent=1 // pred_region
      _
    $region13: #{tpu_custom_call.1} parent=1 // pred_fallthru
      _
    // Predicated region
    $region14: #{tpu_custom_call.1} parent=1 // pred_check
      _
    $region15: #{tpu_custom_call.1} parent=1 // pred_check_branch
      %18 = sbr.rel (0) target = $region17
    $region16: #{tpu_custom_call.1} parent=1 // pred_region
      _
    $region17: #{tpu_custom_call.1} parent=1 // pred_fallthru
      _
    // Predicated region
    $region18: #{tpu_custom_call.1} parent=1 // pred_check
      _
    $region19: #{tpu_custom_call.1} parent=1 // pred_check_branch
      %20 = sbr.rel (0) target = $region21
    $region20: #{tpu_custom_call.1} parent=1 // pred_region
      _
    $region21: #{tpu_custom_call.1} parent=1 // pred_fallthru
      _
    %v21 = vld [vmem:[%s0] sm:$0x77]
    %v22 = vld [vmem:[%s0 + $0x8] sm:$0x7]
    %v23 = vld [vmem:[%s1] sm:$0xff]
    %v24 = vld [vmem:[%s1 + $0x8] sm:$0x3]
    %v25 = vld [vmem:[%s2] sm:$0xff]
    %v26 = vld [vmem:[%s2 + $0x8] sm:$0x3]
    %v27 = vld [vmem:[%s3] sm:$0xf]
    %v28 = vld [vmem:[%s4] sm:$0xf]
    %30 = vset.pattern.permute.xlu0 0
    %31 = vperm.xlu0 %30, %v23
    %v32 = vpop.permute.xlu0 %31
    %35 = vset.pattern.permute.xlu0 0
    %36 = vperm.xlu0 %35, %v24
    %v37 = vpop.permute.xlu0 %36
    %v41 = vlaneseq
    %v42 = vshrl.u32 %v41, 7
    %v43 = vsub.s32 0, %v42
    %v44 = vrot.slane %v21, %v43
    %v45 = vlaneseq
    %v46 = vshrl.u32 %v45, 7
    %v47 = vsub.s32 4, %v46
    %v48 = vrot.slane %v21, %v47
    %v49 = vlaneseq
    %v50 = vshrl.u32 %v49, 7
    %v51 = vsub.s32 0, %v50
    %v52 = vrot.slane %v22, %v51
    %v56 = vlaneseq
    %v57 = vshrl.u32 %v56, 7
    %v58 = vsub.s32 0, %v57
    %v59 = vrot.slane %v44, %v58
    %v60 = vlaneseq
    %v61 = vshrl.u32 %v60, 7
    %v62 = vsub.s32 0, %v61
    %v63 = vrot.slane %v48, %v62
    %v64 = vlaneseq
    %v65 = vshrl.u32 %v64, 7
    %v66 = vsub.s32 0, %v65
    %v67 = vrot.slane %v52, %v66
    %v68 = vmul.f32 %v32, %v59
    %v69 = vmul.f32 %v32, %v63
    %v70 = vmul.f32 %v32, %v67
    %v71 = vmul.f32 %v37, %v59
    %v72 = vmul.f32 %v37, %v63
    %v73 = vmul.f32 %v37, %v67
    %75 = vset.pattern.permute.xlu0 0
    %76 = vperm.xlu0 %75, %v25
    %v77 = vpop.permute.xlu0 %76
    %80 = vset.pattern.permute.xlu0 0
    %81 = vperm.xlu0 %80, %v26
    %v82 = vpop.permute.xlu0 %81
    %v84 = vadd.f32 %v77, %v68
    %v85 = vadd.f32 %v77, %v69
    %v86 = vadd.f32 %v77, %v70
    %v87 = vadd.f32 %v82, %v71
    %v88 = vadd.f32 %v82, %v72
    %v89 = vadd.f32 %v82, %v73
    %90 = vset.pattern.permute.xlu0 1
    %91 = vperm.xlu0 %90, %v23
    %v92 = vpop.permute.xlu0 %91
    %94 = vset.pattern.permute.xlu0 1
    %95 = vperm.xlu0 %94, %v24
    %v96 = vpop.permute.xlu0 %95
    %v98 = vlaneseq
    %v99 = vshrl.u32 %v98, 7
    %v100 = vsub.s32 1, %v99
    %v101 = vrot.slane %v21, %v100
    %v102 = vlaneseq
    %v103 = vshrl.u32 %v102, 7
    %v104 = vsub.s32 5, %v103
    %v105 = vrot.slane %v21, %v104
    %v106 = vlaneseq
    %v107 = vshrl.u32 %v106, 7
    %v108 = vsub.s32 1, %v107
    %v109 = vrot.slane %v22, %v108
    %v113 = vlaneseq
    %v114 = vshrl.u32 %v113, 7
    %v115 = vsub.s32 1, %v114
    %v116 = vrot.slane %v101, %v115
    %v117 = vlaneseq
    %v118 = vshrl.u32 %v117, 7
    %v119 = vsub.s32 1, %v118
    %v120 = vrot.slane %v105, %v119
    %v121 = vlaneseq
    %v122 = vshrl.u32 %v121, 7
    %v123 = vsub.s32 1, %v122
    %v124 = vrot.slane %v109, %v123
    %v125 = vmul.f32 %v92, %v116
    %v126 = vmul.f32 %v92, %v120
    %v127 = vmul.f32 %v92, %v124
    %v128 = vmul.f32 %v96, %v116
    %v129 = vmul.f32 %v96, %v120
    %v130 = vmul.f32 %v96, %v124
    %v131 = vadd.f32 %v84, %v125
    %v132 = vadd.f32 %v85, %v126
    %v133 = vadd.f32 %v86, %v127
    %v134 = vadd.f32 %v87, %v128
    %v135 = vadd.f32 %v88, %v129
    %v136 = vadd.f32 %v89, %v130
    %137 = vset.pattern.permute.xlu0 2
    %138 = vperm.xlu0 %137, %v23
    %v139 = vpop.permute.xlu0 %138
    %141 = vset.pattern.permute.xlu0 2
    %142 = vperm.xlu0 %141, %v24
    %v143 = vpop.permute.xlu0 %142
    %v145 = vlaneseq
    %v146 = vshrl.u32 %v145, 7
    %v147 = vsub.s32 2, %v146
    %v148 = vrot.slane %v21, %v147
    %v149 = vlaneseq
    %v150 = vshrl.u32 %v149, 7
    %v151 = vsub.s32 6, %v150
    %v152 = vrot.slane %v21, %v151
    %v153 = vlaneseq
    %v154 = vshrl.u32 %v153, 7
    %v155 = vsub.s32 2, %v154
    %v156 = vrot.slane %v22, %v155
    %v160 = vlaneseq
    %v161 = vshrl.u32 %v160, 7
    %v162 = vsub.s32 2, %v161
    %v163 = vrot.slane %v148, %v162
    %v164 = vlaneseq
    %v165 = vshrl.u32 %v164, 7
    %v166 = vsub.s32 2, %v165
    %v167 = vrot.slane %v152, %v166
    %v168 = vlaneseq
    %v169 = vshrl.u32 %v168, 7
    %v170 = vsub.s32 2, %v169
    %v171 = vrot.slane %v156, %v170
    %v172 = vmul.f32 %v139, %v163
    %v173 = vmul.f32 %v139, %v167
    %v174 = vmul.f32 %v139, %v171
    %v175 = vmul.f32 %v143, %v163
    %v176 = vmul.f32 %v143, %v167
    %v177 = vmul.f32 %v143, %v171
    %v178 = vadd.f32 %v131, %v172
    %v179 = vadd.f32 %v132, %v173
    %v180 = vadd.f32 %v133, %v174
    %v181 = vadd.f32 %v134, %v175
    %v182 = vadd.f32 %v135, %v176
    %v183 = vadd.f32 %v136, %v177
    %vm184 = vcmask 1041408
    %v185 = vsel %vm184, %v181, 0.0
    %v186 = vadd.f32 %v178, %v185
    %v187 = vrot.slane %v186, 4
    %v188 = vadd.f32 %v186, %v187
    %v189 = vrot.slane %v188, 2
    %v190 = vadd.f32 %v188, %v189
    %v191 = vrot.slane %v190, 1
    %v192 = vadd.f32 %v190, %v191
    %v193 = vsel %vm184, %v182, 0.0
    %v194 = vadd.f32 %v179, %v193
    %v195 = vrot.slane %v194, 4
    %v196 = vadd.f32 %v194, %v195
    %v197 = vrot.slane %v196, 2
    %v198 = vadd.f32 %v196, %v197
    %v199 = vrot.slane %v198, 1
    %v200 = vadd.f32 %v198, %v199
    %v201 = vsel %vm184, %v183, 0.0
    %v202 = vadd.f32 %v180, %v201
    %v203 = vrot.slane %v202, 4
    %v204 = vadd.f32 %v202, %v203
    %v205 = vrot.slane %v204, 2
    %v206 = vadd.f32 %v204, %v205
    %v207 = vrot.slane %v206, 1
    %v208 = vadd.f32 %v206, %v207
    %v209 = vrcp.pop 10.0
    %v210 = vmul.f32 %v192, %v209
    %v211 = vmul.f32 %v200, %v209
    %v212 = vmul.f32 %v208, %v209
    %v213 = vsub.f32 %v178, %v210
    %v214 = vsub.f32 %v179, %v211
    %v215 = vsub.f32 %v180, %v212
    %v216 = vsub.f32 %v181, %v210
    %v217 = vsub.f32 %v182, %v211
    %v218 = vsub.f32 %v183, %v212
    %v219 = vmul.f32 %v213, %v213
    %v220 = vmul.f32 %v214, %v214
    %v221 = vmul.f32 %v215, %v215
    %v222 = vmul.f32 %v216, %v216
    %v223 = vmul.f32 %v217, %v217
    %v224 = vmul.f32 %v218, %v218
    %v225 = vsel %vm184, %v222, 0.0
    %v226 = vadd.f32 %v219, %v225
    %v227 = vrot.slane %v226, 4
    %v228 = vadd.f32 %v226, %v227
    %v229 = vrot.slane %v228, 2
    %v230 = vadd.f32 %v228, %v229
    %v231 = vrot.slane %v230, 1
    %v232 = vadd.f32 %v230, %v231
    %v233 = vsel %vm184, %v223, 0.0
    %v234 = vadd.f32 %v220, %v233
    %v235 = vrot.slane %v234, 4
    %v236 = vadd.f32 %v234, %v235
    %v237 = vrot.slane %v236, 2
    %v238 = vadd.f32 %v236, %v237
    %v239 = vrot.slane %v238, 1
    %v240 = vadd.f32 %v238, %v239
    %v241 = vsel %vm184, %v224, 0.0
    %v242 = vadd.f32 %v221, %v241
    %v243 = vrot.slane %v242, 4
    %v244 = vadd.f32 %v242, %v243
    %v245 = vrot.slane %v244, 2
    %v246 = vadd.f32 %v244, %v245
    %v247 = vrot.slane %v246, 1
    %v248 = vadd.f32 %v246, %v247
    %v249 = vmul.f32 %v232, %v209
    %v250 = vmul.f32 %v240, %v209
    %v251 = vmul.f32 %v248, %v209
    %v252 = vadd.f32 %v249, 1e-05
    %v253 = vadd.f32 %v250, 1e-05
    %v254 = vadd.f32 %v251, 1e-05
    %v255 = vrsqrt.pop %v252
    %v256 = vrsqrt.pop %v253
    %v257 = vrsqrt.pop %v254
    %v258 = vmul.f32 %v213, %v255
    %v259 = vmul.f32 %v214, %v256
    %v260 = vmul.f32 %v215, %v257
    %v261 = vmul.f32 %v216, %v255
    %v262 = vmul.f32 %v217, %v256
    %v263 = vmul.f32 %v218, %v257
    %v264 = vmax.f32 %v258, 0.0
    %v265 = vmax.f32 %v259, 0.0
    %v266 = vmax.f32 %v260, 0.0
    %v267 = vmax.f32 %v261, 0.0
    %v268 = vmax.f32 %v262, 0.0
    %v269 = vmax.f32 %v263, 0.0
    %271 = vset.pattern.permute.xlu0 0
    %272 = vperm.xlu0 %271, %v28
    %v273 = vpop.permute.xlu0 %272
    %vm275 = vcmask 80896
    %v277 = vsel %vm275, %v27, 0
    %v280 = vsel %vm184, %v267, 0
    %v283 = vsel %vm184, %v268, 0
    %v286 = vsel %vm184, %v269, 0
    %v288 = vand.u32 %v265, 4294901760
    %289 = vmatprep.subr.mxu0 %v288
    %v290 = vand.u32 %v264, 4294901760
    %291 = vmatpush1.msra.mxu0 %v290
    %v292 = vand.u32 %v283, 4294901760
    %293 = vmatprep.subr.mxu0 %v292
    %v294 = vand.u32 %v280, 4294901760
    %295 = vmatpush1.msra.mxu0 %v294
    %296 = vmatprep.subr.mxu0 0.0
    %297 = vmatpush1.msra.mxu0 0.0
    %298 = vmatprep.subr.mxu0 0.0
    %299 = vmatpush1.msra.mxu0 0.0
    %300 = vmatprep.subr.mxu0 0.0
    %301 = vmatpush1.msra.mxu0 0.0
    %302 = vmatprep.subr.mxu0 0.0
    %303 = vmatpush1.msra.mxu0 0.0
    %304 = vmatprep.subr.mxu0 0.0
    %305 = vmatpush1.msra.mxu0 0.0
    %306 = vmatprep.subr.mxu0 0.0
    %307 = vmatpush1.msra.mxu0 0.0
    %308 = vmatprep.subr.mxu0 0.0
    %309 = vmatpush1.msra.mxu0 0.0
    %310 = vmatprep.subr.mxu0 0.0
    %311 = vmatpush1.msra.mxu0 0.0
    %312 = vmatprep.subr.mxu0 0.0
    %313 = vmatpush1.msra.mxu0 0.0
    %314 = vmatprep.subr.mxu0 0.0
    %315 = vmatpush1.msra.mxu0 0.0
    %316 = vmatprep.subr.mxu0 0.0
    %317 = vmatpush1.msra.mxu0 0.0
    %318 = vmatprep.subr.mxu0 0.0
    %319 = vmatpush1.msra.mxu0 0.0
    %320 = vmatprep.subr.mxu0 0.0
    %321 = vmatpush1.msra.mxu0 0.0
    %322 = vmatprep.subr.mxu0 0.0
    %323 = vmatpush1.msra.mxu0 0.0
    %324 = vmatprep.subr.mxu0 0.0
    %325 = vmatpush1.msra.mxu0 0.0
    %326 = vmatprep.subr.mxu0 0.0
    %327 = vmatpush1.msra.mxu0 0.0
    %328 = vmatprep.subr.mxu0 0.0
    %329 = vmatpush1.msra.mxu0 0.0
    %330 = vmatprep.subr.mxu0 0.0
    %331 = vmatpush1.msra.mxu0 0.0
    %332 = vmatprep.subr.mxu0 0.0
    %333 = vmatpush1.msra.mxu0 0.0
    %334 = vmatprep.subr.mxu0 0.0
    %335 = vmatpush1.msra.mxu0 0.0
    %336 = vmatprep.subr.mxu0 0.0
    %337 = vmatpush1.msra.mxu0 0.0
    %338 = vmatprep.subr.mxu0 0.0
    %339 = vmatpush1.msra.mxu0 0.0
    %340 = vmatprep.subr.mxu0 0.0
    %341 = vmatpush1.msra.mxu0 0.0
    %342 = vmatprep.subr.mxu0 0.0
    %343 = vmatpush1.msra.mxu0 0.0
    %344 = vmatprep.subr.mxu0 0.0
    %345 = vmatpush1.msra.mxu0 0.0
    %346 = vmatprep.subr.mxu0 0.0
    %347 = vmatpush1.msra.mxu0 0.0
    %348 = vmatprep.subr.mxu0 0.0
    %349 = vmatpush1.msra.mxu0 0.0
    %350 = vmatprep.subr.mxu0 0.0
    %351 = vmatpush1.msra.mxu0 0.0
    %352 = vmatprep.subr.mxu0 0.0
    %353 = vmatpush1.msra.mxu0 0.0
    %354 = vmatprep.subr.mxu0 0.0
    %355 = vmatpush1.msra.mxu0 0.0
    %356 = vmatprep.mubr.f32.mxu0 0.0
    %v357 = vand.u32 %v277, 4294901760
    %v358 = vsub.f32 %v277, %v357
    %v359 = vand.u32 %v358, 4294901760
    %v360 = vsub.f32 %v358, %v359
    %v361 = vand.u32 %v360, 4294901760
    %362 = vmatmul.mubr.f32.gmra.mrb[0].mxu0 %v361
    %v363 = vpop.f32.mrb[0].mxu0
    %v364 = vadd.f32 %v273, %v363
    %v365 = vpop.f32.mrb[0].mxu0
    %v366 = vadd.f32 %v273, %v365
    %367 = vdwg.mxu0
    %v368 = vand.u32 %v265, 4294901760
    %v369 = vsub.f32 %v265, %v368
    %v370 = vand.u32 %v369, 4294901760
    %v371 = vsub.f32 %v369, %v370
    %v372 = vand.u32 %v371, 4294901760
    %373 = vmatprep.subr.mxu0 %v372
    %v374 = vand.u32 %v264, 4294901760
    %v375 = vsub.f32 %v264, %v374
    %v376 = vand.u32 %v375, 4294901760
    %v377 = vsub.f32 %v375, %v376
    %v378 = vand.u32 %v377, 4294901760
    %379 = vmatpush1.msra.mxu0 %v378
    %v380 = vand.u32 %v283, 4294901760
    %v381 = vsub.f32 %v283, %v380
    %v382 = vand.u32 %v381, 4294901760
    %v383 = vsub.f32 %v381, %v382
    %v384 = vand.u32 %v383, 4294901760
    %385 = vmatprep.subr.mxu0 %v384
    %v386 = vand.u32 %v280, 4294901760
    %v387 = vsub.f32 %v280, %v386
    %v388 = vand.u32 %v387, 4294901760
    %v389 = vsub.f32 %v387, %v388
    %v390 = vand.u32 %v389, 4294901760
    %391 = vmatpush1.msra.mxu0 %v390
    %392 = vmatprep.subr.mxu0 0.0
    %393 = vmatpush1.msra.mxu0 0.0
    %394 = vmatprep.subr.mxu0 0.0
    %395 = vmatpush1.msra.mxu0 0.0
    %396 = vmatprep.subr.mxu0 0.0
    %397 = vmatpush1.msra.mxu0 0.0
    %398 = vmatprep.subr.mxu0 0.0
    %399 = vmatpush1.msra.mxu0 0.0
    %400 = vmatprep.subr.mxu0 0.0
    %401 = vmatpush1.msra.mxu0 0.0
    %402 = vmatprep.subr.mxu0 0.0
    %403 = vmatpush1.msra.mxu0 0.0
    %404 = vmatprep.subr.mxu0 0.0
    %405 = vmatpush1.msra.mxu0 0.0
    %406 = vmatprep.subr.mxu0 0.0
    %407 = vmatpush1.msra.mxu0 0.0
    %408 = vmatprep.subr.mxu0 0.0
    %409 = vmatpush1.msra.mxu0 0.0
    %410 = vmatprep.subr.mxu0 0.0
    %411 = vmatpush1.msra.mxu0 0.0
    %412 = vmatprep.subr.mxu0 0.0
    %413 = vmatpush1.msra.mxu0 0.0
    %414 = vmatprep.subr.mxu0 0.0
    %415 = vmatpush1.msra.mxu0 0.0
    %416 = vmatprep.subr.mxu0 0.0
    %417 = vmatpush1.msra.mxu0 0.0
    %418 = vmatprep.subr.mxu0 0.0
    %419 = vmatpush1.msra.mxu0 0.0
    %420 = vmatprep.subr.mxu0 0.0
    %421 = vmatpush1.msra.mxu0 0.0
    %422 = vmatprep.subr.mxu0 0.0
    %423 = vmatpush1.msra.mxu0 0.0
    %424 = vmatprep.subr.mxu0 0.0
    %425 = vmatpush1.msra.mxu0 0.0
    %426 = vmatprep.subr.mxu0 0.0
    %427 = vmatpush1.msra.mxu0 0.0
    %428 = vmatprep.subr.mxu0 0.0
    %429 = vmatpush1.msra.mxu0 0.0
    %430 = vmatprep.subr.mxu0 0.0
    %431 = vmatpush1.msra.mxu0 0.0
    %432 = vmatprep.subr.mxu0 0.0
    %433 = vmatpush1.msra.mxu0 0.0
    %434 = vmatprep.subr.mxu0 0.0
    %435 = vmatpush1.msra.mxu0 0.0
    %436 = vmatprep.subr.mxu0 0.0
    %437 = vmatpush1.msra.mxu0 0.0
    %438 = vmatprep.subr.mxu0 0.0
    %439 = vmatpush1.msra.mxu0 0.0
    %440 = vmatprep.subr.mxu0 0.0
    %441 = vmatpush1.msra.mxu0 0.0
    %442 = vmatprep.subr.mxu0 0.0
    %443 = vmatpush1.msra.mxu0 0.0
    %444 = vmatprep.subr.mxu0 0.0
    %445 = vmatpush1.msra.mxu0 0.0
    %446 = vmatprep.subr.mxu0 0.0
    %447 = vmatpush1.msra.mxu0 0.0
    %448 = vmatprep.subr.mxu0 0.0
    %449 = vmatpush1.msra.mxu0 0.0
    %450 = vmatprep.subr.mxu0 0.0
    %451 = vmatpush1.msra.mxu0 0.0
    %452 = vmatprep.mubr.f32.mxu0 0.0
    %v453 = vand.u32 %v277, 4294901760
    %454 = vmatmul.mubr.f32.gmra.mrb[0].mxu0 %v453
    %v455 = vpop.f32.mrb[0].mxu0
    %v456 = vadd.f32 %v364, %v455
    %v457 = vpop.f32.mrb[0].mxu0
    %v458 = vadd.f32 %v366, %v457
    %459 = vdwg.mxu0
    %v460 = vand.u32 %v265, 4294901760
    %v461 = vsub.f32 %v265, %v460
    %462 = vmatprep.subr.mxu0 %v461
    %v463 = vand.u32 %v264, 4294901760
    %v464 = vsub.f32 %v264, %v463
    %465 = vmatpush1.msra.mxu0 %v464
    %v466 = vand.u32 %v283, 4294901760
    %v467 = vsub.f32 %v283, %v466
    %468 = vmatprep.subr.mxu0 %v467
    %v469 = vand.u32 %v280, 4294901760
    %v470 = vsub.f32 %v280, %v469
    %471 = vmatpush1.msra.mxu0 %v470
    %472 = vmatprep.subr.mxu0 0.0
    %473 = vmatpush1.msra.mxu0 0.0
    %474 = vmatprep.subr.mxu0 0.0
    %475 = vmatpush1.msra.mxu0 0.0
    %476 = vmatprep.subr.mxu0 0.0
    %477 = vmatpush1.msra.mxu0 0.0
    %478 = vmatprep.subr.mxu0 0.0
    %479 = vmatpush1.msra.mxu0 0.0
    %480 = vmatprep.subr.mxu0 0.0
    %481 = vmatpush1.msra.mxu0 0.0
    %482 = vmatprep.subr.mxu0 0.0
    %483 = vmatpush1.msra.mxu0 0.0
    %484 = vmatprep.subr.mxu0 0.0
    %485 = vmatpush1.msra.mxu0 0.0
    %486 = vmatprep.subr.mxu0 0.0
    %487 = vmatpush1.msra.mxu0 0.0
    %488 = vmatprep.subr.mxu0 0.0
    %489 = vmatpush1.msra.mxu0 0.0
    %490 = vmatprep.subr.mxu0 0.0
    %491 = vmatpush1.msra.mxu0 0.0
    %492 = vmatprep.subr.mxu0 0.0
    %493 = vmatpush1.msra.mxu0 0.0
    %494 = vmatprep.subr.mxu0 0.0
    %495 = vmatpush1.msra.mxu0 0.0
    %496 = vmatprep.subr.mxu0 0.0
    %497 = vmatpush1.msra.mxu0 0.0
    %498 = vmatprep.subr.mxu0 0.0
    %499 = vmatpush1.msra.mxu0 0.0
    %500 = vmatprep.subr.mxu0 0.0
    %501 = vmatpush1.msra.mxu0 0.0
    %502 = vmatprep.subr.mxu0 0.0
    %503 = vmatpush1.msra.mxu0 0.0
    %504 = vmatprep.subr.mxu0 0.0
    %505 = vmatpush1.msra.mxu0 0.0
    %506 = vmatprep.subr.mxu0 0.0
    %507 = vmatpush1.msra.mxu0 0.0
    %508 = vmatprep.subr.mxu0 0.0
    %509 = vmatpush1.msra.mxu0 0.0
    %510 = vmatprep.subr.mxu0 0.0
    %511 = vmatpush1.msra.mxu0 0.0
    %512 = vmatprep.subr.mxu0 0.0
    %513 = vmatpush1.msra.mxu0 0.0
    %514 = vmatprep.subr.mxu0 0.0
    %515 = vmatpush1.msra.mxu0 0.0
    %516 = vmatprep.subr.mxu0 0.0
    %517 = vmatpush1.msra.mxu0 0.0
    %518 = vmatprep.subr.mxu0 0.0
    %519 = vmatpush1.msra.mxu0 0.0
    %520 = vmatprep.subr.mxu0 0.0
    %521 = vmatpush1.msra.mxu0 0.0
    %522 = vmatprep.subr.mxu0 0.0
    %523 = vmatpush1.msra.mxu0 0.0
    %524 = vmatprep.subr.mxu0 0.0
    %525 = vmatpush1.msra.mxu0 0.0
    %526 = vmatprep.subr.mxu0 0.0
    %527 = vmatpush1.msra.mxu0 0.0
    %528 = vmatprep.subr.mxu0 0.0
    %529 = vmatpush1.msra.mxu0 0.0
    %530 = vmatprep.subr.mxu0 0.0
    %531 = vmatpush1.msra.mxu0 0.0
    %532 = vmatprep.mubr.f32.mxu0 0.0
    %v533 = vand.u32 %v277, 4294901760
    %v534 = vsub.f32 %v277, %v533
    %535 = vmatmul.mubr.f32.gmra.mrb[0].mxu0 %v534
    %v536 = vpop.f32.mrb[0].mxu0
    %v537 = vadd.f32 %v456, %v536
    %v538 = vpop.f32.mrb[0].mxu0
    %v539 = vadd.f32 %v458, %v538
    %540 = vdwg.mxu0
    %v541 = vand.u32 %v265, 4294901760
    %542 = vmatprep.subr.mxu0 %v541
    %v543 = vand.u32 %v264, 4294901760
    %544 = vmatpush1.msra.mxu0 %v543
    %v545 = vand.u32 %v283, 4294901760
    %546 = vmatprep.subr.mxu0 %v545
    %v547 = vand.u32 %v280, 4294901760
    %548 = vmatpush1.msra.mxu0 %v547
    %549 = vmatprep.subr.mxu0 0.0
    %550 = vmatpush1.msra.mxu0 0.0
    %551 = vmatprep.subr.mxu0 0.0
    %552 = vmatpush1.msra.mxu0 0.0
    %553 = vmatprep.subr.mxu0 0.0
    %554 = vmatpush1.msra.mxu0 0.0
    %555 = vmatprep.subr.mxu0 0.0
    %556 = vmatpush1.msra.mxu0 0.0
    %557 = vmatprep.subr.mxu0 0.0
    %558 = vmatpush1.msra.mxu0 0.0
    %559 = vmatprep.subr.mxu0 0.0
    %560 = vmatpush1.msra.mxu0 0.0
    %561 = vmatprep.subr.mxu0 0.0
    %562 = vmatpush1.msra.mxu0 0.0
    %563 = vmatprep.subr.mxu0 0.0
    %564 = vmatpush1.msra.mxu0 0.0
    %565 = vmatprep.subr.mxu0 0.0
    %566 = vmatpush1.msra.mxu0 0.0
    %567 = vmatprep.subr.mxu0 0.0
    %568 = vmatpush1.msra.mxu0 0.0
    %569 = vmatprep.subr.mxu0 0.0
    %570 = vmatpush1.msra.mxu0 0.0
    %571 = vmatprep.subr.mxu0 0.0
    %572 = vmatpush1.msra.mxu0 0.0
    %573 = vmatprep.subr.mxu0 0.0
    %574 = vmatpush1.msra.mxu0 0.0
    %575 = vmatprep.subr.mxu0 0.0
    %576 = vmatpush1.msra.mxu0 0.0
    %577 = vmatprep.subr.mxu0 0.0
    %578 = vmatpush1.msra.mxu0 0.0
    %579 = vmatprep.subr.mxu0 0.0
    %580 = vmatpush1.msra.mxu0 0.0
    %581 = vmatprep.subr.mxu0 0.0
    %582 = vmatpush1.msra.mxu0 0.0
    %583 = vmatprep.subr.mxu0 0.0
    %584 = vmatpush1.msra.mxu0 0.0
    %585 = vmatprep.subr.mxu0 0.0
    %586 = vmatpush1.msra.mxu0 0.0
    %587 = vmatprep.subr.mxu0 0.0
    %588 = vmatpush1.msra.mxu0 0.0
    %589 = vmatprep.subr.mxu0 0.0
    %590 = vmatpush1.msra.mxu0 0.0
    %591 = vmatprep.subr.mxu0 0.0
    %592 = vmatpush1.msra.mxu0 0.0
    %593 = vmatprep.subr.mxu0 0.0
    %594 = vmatpush1.msra.mxu0 0.0
    %595 = vmatprep.subr.mxu0 0.0
    %596 = vmatpush1.msra.mxu0 0.0
    %597 = vmatprep.subr.mxu0 0.0
    %598 = vmatpush1.msra.mxu0 0.0
    %599 = vmatprep.subr.mxu0 0.0
    %600 = vmatpush1.msra.mxu0 0.0
    %601 = vmatprep.subr.mxu0 0.0
    %602 = vmatpush1.msra.mxu0 0.0
    %603 = vmatprep.subr.mxu0 0.0
    %604 = vmatpush1.msra.mxu0 0.0
    %605 = vmatprep.subr.mxu0 0.0
    %606 = vmatpush1.msra.mxu0 0.0
    %607 = vmatprep.subr.mxu0 0.0
    %608 = vmatpush1.msra.mxu0 0.0
    %609 = vmatprep.mubr.f32.mxu0 0.0
    %v610 = vand.u32 %v277, 4294901760
    %v611 = vsub.f32 %v277, %v610
    %v612 = vand.u32 %v611, 4294901760
    %613 = vmatmul.mubr.f32.gmra.mrb[0].mxu0 %v612
    %v614 = vpop.f32.mrb[0].mxu0
    %v615 = vadd.f32 %v537, %v614
    %v616 = vpop.f32.mrb[0].mxu0
    %v617 = vadd.f32 %v539, %v616
    %618 = vdwg.mxu0
    %v619 = vand.u32 %v265, 4294901760
    %v620 = vsub.f32 %v265, %v619
    %v621 = vand.u32 %v620, 4294901760
    %622 = vmatprep.subr.mxu0 %v621
    %v623 = vand.u32 %v264, 4294901760
    %v624 = vsub.f32 %v264, %v623
    %v625 = vand.u32 %v624, 4294901760
    %626 = vmatpush1.msra.mxu0 %v625
    %v627 = vand.u32 %v283, 4294901760
    %v628 = vsub.f32 %v283, %v627
    %v629 = vand.u32 %v628, 4294901760
    %630 = vmatprep.subr.mxu0 %v629
    %v631 = vand.u32 %v280, 4294901760
    %v632 = vsub.f32 %v280, %v631
    %v633 = vand.u32 %v632, 4294901760
    %634 = vmatpush1.msra.mxu0 %v633
    %635 = vmatprep.subr.mxu0 0.0
    %636 = vmatpush1.msra.mxu0 0.0
    %637 = vmatprep.subr.mxu0 0.0
    %638 = vmatpush1.msra.mxu0 0.0
    %639 = vmatprep.subr.mxu0 0.0
    %640 = vmatpush1.msra.mxu0 0.0
    %641 = vmatprep.subr.mxu0 0.0
    %642 = vmatpush1.msra.mxu0 0.0
    %643 = vmatprep.subr.mxu0 0.0
    %644 = vmatpush1.msra.mxu0 0.0
    %645 = vmatprep.subr.mxu0 0.0
    %646 = vmatpush1.msra.mxu0 0.0
    %647 = vmatprep.subr.mxu0 0.0
    %648 = vmatpush1.msra.mxu0 0.0
    %649 = vmatprep.subr.mxu0 0.0
    %650 = vmatpush1.msra.mxu0 0.0
    %651 = vmatprep.subr.mxu0 0.0
    %652 = vmatpush1.msra.mxu0 0.0
    %653 = vmatprep.subr.mxu0 0.0
    %654 = vmatpush1.msra.mxu0 0.0
    %655 = vmatprep.subr.mxu0 0.0
    %656 = vmatpush1.msra.mxu0 0.0
    %657 = vmatprep.subr.mxu0 0.0
    %658 = vmatpush1.msra.mxu0 0.0
    %659 = vmatprep.subr.mxu0 0.0
    %660 = vmatpush1.msra.mxu0 0.0
    %661 = vmatprep.subr.mxu0 0.0
    %662 = vmatpush1.msra.mxu0 0.0
    %663 = vmatprep.subr.mxu0 0.0
    %664 = vmatpush1.msra.mxu0 0.0
    %665 = vmatprep.subr.mxu0 0.0
    %666 = vmatpush1.msra.mxu0 0.0
    %667 = vmatprep.subr.mxu0 0.0
    %668 = vmatpush1.msra.mxu0 0.0
    %669 = vmatprep.subr.mxu0 0.0
    %670 = vmatpush1.msra.mxu0 0.0
    %671 = vmatprep.subr.mxu0 0.0
    %672 = vmatpush1.msra.mxu0 0.0
    %673 = vmatprep.subr.mxu0 0.0
    %674 = vmatpush1.msra.mxu0 0.0
    %675 = vmatprep.subr.mxu0 0.0
    %676 = vmatpush1.msra.mxu0 0.0
    %677 = vmatprep.subr.mxu0 0.0
    %678 = vmatpush1.msra.mxu0 0.0
    %679 = vmatprep.subr.mxu0 0.0
    %680 = vmatpush1.msra.mxu0 0.0
    %681 = vmatprep.subr.mxu0 0.0
    %682 = vmatpush1.msra.mxu0 0.0
    %683 = vmatprep.subr.mxu0 0.0
    %684 = vmatpush1.msra.mxu0 0.0
    %685 = vmatprep.subr.mxu0 0.0
    %686 = vmatpush1.msra.mxu0 0.0
    %687 = vmatprep.subr.mxu0 0.0
    %688 = vmatpush1.msra.mxu0 0.0
    %689 = vmatprep.subr.mxu0 0.0
    %690 = vmatpush1.msra.mxu0 0.0
    %691 = vmatprep.subr.mxu0 0.0
    %692 = vmatpush1.msra.mxu0 0.0
    %693 = vmatprep.subr.mxu0 0.0
    %694 = vmatpush1.msra.mxu0 0.0
    %695 = vmatprep.mubr.f32.mxu0 0.0
    %v696 = vand.u32 %v277, 4294901760
    %697 = vmatmul.mubr.f32.gmra.mrb[0].mxu0 %v696
    %v698 = vpop.f32.mrb[0].mxu0
    %v699 = vadd.f32 %v615, %v698
    %v700 = vpop.f32.mrb[0].mxu0
    %v701 = vadd.f32 %v617, %v700
    %702 = vdwg.mxu0
    %v703 = vand.u32 %v265, 4294901760
    %704 = vmatprep.subr.mxu0 %v703
    %v705 = vand.u32 %v264, 4294901760
    %706 = vmatpush1.msra.mxu0 %v705
    %v707 = vand.u32 %v283, 4294901760
    %708 = vmatprep.subr.mxu0 %v707
    %v709 = vand.u32 %v280, 4294901760
    %710 = vmatpush1.msra.mxu0 %v709
    %711 = vmatprep.subr.mxu0 0.0
    %712 = vmatpush1.msra.mxu0 0.0
    %713 = vmatprep.subr.mxu0 0.0
    %714 = vmatpush1.msra.mxu0 0.0
    %715 = vmatprep.subr.mxu0 0.0
    %716 = vmatpush1.msra.mxu0 0.0
    %717 = vmatprep.subr.mxu0 0.0
    %718 = vmatpush1.msra.mxu0 0.0
    %719 = vmatprep.subr.mxu0 0.0
    %720 = vmatpush1.msra.mxu0 0.0
    %721 = vmatprep.subr.mxu0 0.0
    %722 = vmatpush1.msra.mxu0 0.0
    %723 = vmatprep.subr.mxu0 0.0
    %724 = vmatpush1.msra.mxu0 0.0
    %725 = vmatprep.subr.mxu0 0.0
    %726 = vmatpush1.msra.mxu0 0.0
    %727 = vmatprep.subr.mxu0 0.0
    %728 = vmatpush1.msra.mxu0 0.0
    %729 = vmatprep.subr.mxu0 0.0
    %730 = vmatpush1.msra.mxu0 0.0
    %731 = vmatprep.subr.mxu0 0.0
    %732 = vmatpush1.msra.mxu0 0.0
    %733 = vmatprep.subr.mxu0 0.0
    %734 = vmatpush1.msra.mxu0 0.0
    %735 = vmatprep.subr.mxu0 0.0
    %736 = vmatpush1.msra.mxu0 0.0
    %737 = vmatprep.subr.mxu0 0.0
    %738 = vmatpush1.msra.mxu0 0.0
    %739 = vmatprep.subr.mxu0 0.0
    %740 = vmatpush1.msra.mxu0 0.0
    %741 = vmatprep.subr.mxu0 0.0
    %742 = vmatpush1.msra.mxu0 0.0
    %743 = vmatprep.subr.mxu0 0.0
    %744 = vmatpush1.msra.mxu0 0.0
    %745 = vmatprep.subr.mxu0 0.0
    %746 = vmatpush1.msra.mxu0 0.0
    %747 = vmatprep.subr.mxu0 0.0
    %748 = vmatpush1.msra.mxu0 0.0
    %749 = vmatprep.subr.mxu0 0.0
    %750 = vmatpush1.msra.mxu0 0.0
    %751 = vmatprep.subr.mxu0 0.0
    %752 = vmatpush1.msra.mxu0 0.0
    %753 = vmatprep.subr.mxu0 0.0
    %754 = vmatpush1.msra.mxu0 0.0
    %755 = vmatprep.subr.mxu0 0.0
    %756 = vmatpush1.msra.mxu0 0.0
    %757 = vmatprep.subr.mxu0 0.0
    %758 = vmatpush1.msra.mxu0 0.0
    %759 = vmatprep.subr.mxu0 0.0
    %760 = vmatpush1.msra.mxu0 0.0
    %761 = vmatprep.subr.mxu0 0.0
    %762 = vmatpush1.msra.mxu0 0.0
    %763 = vmatprep.subr.mxu0 0.0
    %764 = vmatpush1.msra.mxu0 0.0
    %765 = vmatprep.subr.mxu0 0.0
    %766 = vmatpush1.msra.mxu0 0.0
    %767 = vmatprep.subr.mxu0 0.0
    %768 = vmatpush1.msra.mxu0 0.0
    %769 = vmatprep.subr.mxu0 0.0
    %770 = vmatpush1.msra.mxu0 0.0
    %771 = vmatprep.mubr.f32.mxu0 0.0
    %v772 = vand.u32 %v277, 4294901760
    %773 = vmatmul.mubr.f32.gmra.mrb[0].mxu0 %v772
    %v774 = vpop.f32.mrb[0].mxu0
    %v775 = vadd.f32 %v699, %v774
    %v776 = vpop.f32.mrb[0].mxu0
    %v777 = vadd.f32 %v701, %v776
    %778 = vdwg.mxu0
    %779 = vmatprep.subr.mxu0 0.0
    %v780 = vand.u32 %v266, 4294901760
    %781 = vmatpush1.msra.mxu0 %v780
    %782 = vmatprep.subr.mxu0 0.0
    %v783 = vand.u32 %v286, 4294901760
    %784 = vmatpush1.msra.mxu0 %v783
    %785 = vmatprep.subr.mxu0 0.0
    %786 = vmatpush1.msra.mxu0 0.0
    %787 = vmatprep.subr.mxu0 0.0
    %788 = vmatpush1.msra.mxu0 0.0
    %789 = vmatprep.subr.mxu0 0.0
    %790 = vmatpush1.msra.mxu0 0.0
    %791 = vmatprep.subr.mxu0 0.0
    %792 = vmatpush1.msra.mxu0 0.0
    %793 = vmatprep.subr.mxu0 0.0
    %794 = vmatpush1.msra.mxu0 0.0
    %795 = vmatprep.subr.mxu0 0.0
    %796 = vmatpush1.msra.mxu0 0.0
    %797 = vmatprep.subr.mxu0 0.0
    %798 = vmatpush1.msra.mxu0 0.0
    %799 = vmatprep.subr.mxu0 0.0
    %800 = vmatpush1.msra.mxu0 0.0
    %801 = vmatprep.subr.mxu0 0.0
    %802 = vmatpush1.msra.mxu0 0.0
    %803 = vmatprep.subr.mxu0 0.0
    %804 = vmatpush1.msra.mxu0 0.0
    %805 = vmatprep.subr.mxu0 0.0
    %806 = vmatpush1.msra.mxu0 0.0
    %807 = vmatprep.subr.mxu0 0.0
    %808 = vmatpush1.msra.mxu0 0.0
    %809 = vmatprep.subr.mxu0 0.0
    %810 = vmatpush1.msra.mxu0 0.0
    %811 = vmatprep.subr.mxu0 0.0
    %812 = vmatpush1.msra.mxu0 0.0
    %813 = vmatprep.subr.mxu0 0.0
    %814 = vmatpush1.msra.mxu0 0.0
    %815 = vmatprep.subr.mxu0 0.0
    %816 = vmatpush1.msra.mxu0 0.0
    %817 = vmatprep.subr.mxu0 0.0
    %818 = vmatpush1.msra.mxu0 0.0
    %819 = vmatprep.subr.mxu0 0.0
    %820 = vmatpush1.msra.mxu0 0.0
    %821 = vmatprep.subr.mxu0 0.0
    %822 = vmatpush1.msra.mxu0 0.0
    %823 = vmatprep.subr.mxu0 0.0
    %824 = vmatpush1.msra.mxu0 0.0
    %825 = vmatprep.subr.mxu0 0.0
    %826 = vmatpush1.msra.mxu0 0.0
    %827 = vmatprep.subr.mxu0 0.0
    %828 = vmatpush1.msra.mxu0 0.0
    %829 = vmatprep.subr.mxu0 0.0
    %830 = vmatpush1.msra.mxu0 0.0
    %831 = vmatprep.subr.mxu0 0.0
    %832 = vmatpush1.msra.mxu0 0.0
    %833 = vmatprep.subr.mxu0 0.0
    %834 = vmatpush1.msra.mxu0 0.0
    %835 = vmatprep.subr.mxu0 0.0
    %836 = vmatpush1.msra.mxu0 0.0
    %837 = vmatprep.subr.mxu0 0.0
    %838 = vmatpush1.msra.mxu0 0.0
    %839 = vmatprep.subr.mxu0 0.0
    %840 = vmatpush1.msra.mxu0 0.0
    %841 = vmatprep.subr.mxu0 0.0
    %842 = vmatpush1.msra.mxu0 0.0
    %843 = vmatprep.subr.mxu0 0.0
    %844 = vmatpush1.msra.mxu0 0.0
    %845 = vmatprep.mubr.f32.mxu0 0.0
    %v846 = vand.u32 %v277, 4294901760
    %v847 = vsub.f32 %v277, %v846
    %v848 = vand.u32 %v847, 4294901760
    %v849 = vsub.f32 %v847, %v848
    %v850 = vand.u32 %v849, 4294901760
    %851 = vmatmul.mubr.f32.gmra.mrb[0].mxu0 %v850
    %v852 = vpop.f32.mrb[0].mxu0
    %v853 = vadd.f32 %v273, %v852
    %v854 = vpop.f32.mrb[0].mxu0
    %855 = vdwg.mxu0
    %856 = vmatprep.subr.mxu0 0.0
    %v857 = vand.u32 %v266, 4294901760
    %v858 = vsub.f32 %v266, %v857
    %v859 = vand.u32 %v858, 4294901760
    %v860 = vsub.f32 %v858, %v859
    %v861 = vand.u32 %v860, 4294901760
    %862 = vmatpush1.msra.mxu0 %v861
    %863 = vmatprep.subr.mxu0 0.0
    %v864 = vand.u32 %v286, 4294901760
    %v865 = vsub.f32 %v286, %v864
    %v866 = vand.u32 %v865, 4294901760
    %v867 = vsub.f32 %v865, %v866
    %v868 = vand.u32 %v867, 4294901760
    %869 = vmatpush1.msra.mxu0 %v868
    %870 = vmatprep.subr.mxu0 0.0
    %871 = vmatpush1.msra.mxu0 0.0
    %872 = vmatprep.subr.mxu0 0.0
    %873 = vmatpush1.msra.mxu0 0.0
    %874 = vmatprep.subr.mxu0 0.0
    %875 = vmatpush1.msra.mxu0 0.0
    %876 = vmatprep.subr.mxu0 0.0
    %877 = vmatpush1.msra.mxu0 0.0
    %878 = vmatprep.subr.mxu0 0.0
    %879 = vmatpush1.msra.mxu0 0.0
    %880 = vmatprep.subr.mxu0 0.0
    %881 = vmatpush1.msra.mxu0 0.0
    %882 = vmatprep.subr.mxu0 0.0
    %883 = vmatpush1.msra.mxu0 0.0
    %884 = vmatprep.subr.mxu0 0.0
    %885 = vmatpush1.msra.mxu0 0.0
    %886 = vmatprep.subr.mxu0 0.0
    %887 = vmatpush1.msra.mxu0 0.0
    %888 = vmatprep.subr.mxu0 0.0
    %889 = vmatpush1.msra.mxu0 0.0
    %890 = vmatprep.subr.mxu0 0.0
    %891 = vmatpush1.msra.mxu0 0.0
    %892 = vmatprep.subr.mxu0 0.0
    %893 = vmatpush1.msra.mxu0 0.0
    %894 = vmatprep.subr.mxu0 0.0
    %895 = vmatpush1.msra.mxu0 0.0
    %896 = vmatprep.subr.mxu0 0.0
    %897 = vmatpush1.msra.mxu0 0.0
    %898 = vmatprep.subr.mxu0 0.0
    %899 = vmatpush1.msra.mxu0 0.0
    %900 = vmatprep.subr.mxu0 0.0
    %901 = vmatpush1.msra.mxu0 0.0
    %902 = vmatprep.subr.mxu0 0.0
    %903 = vmatpush1.msra.mxu0 0.0
    %904 = vmatprep.subr.mxu0 0.0
    %905 = vmatpush1.msra.mxu0 0.0
    %906 = vmatprep.subr.mxu0 0.0
    %907 = vmatpush1.msra.mxu0 0.0
    %908 = vmatprep.subr.mxu0 0.0
    %909 = vmatpush1.msra.mxu0 0.0
    %910 = vmatprep.subr.mxu0 0.0
    %911 = vmatpush1.msra.mxu0 0.0
    %912 = vmatprep.subr.mxu0 0.0
    %913 = vmatpush1.msra.mxu0 0.0
    %914 = vmatprep.subr.mxu0 0.0
    %915 = vmatpush1.msra.mxu0 0.0
    %916 = vmatprep.subr.mxu0 0.0
    %917 = vmatpush1.msra.mxu0 0.0
    %918 = vmatprep.subr.mxu0 0.0
    %919 = vmatpush1.msra.mxu0 0.0
    %920 = vmatprep.subr.mxu0 0.0
    %921 = vmatpush1.msra.mxu0 0.0
    %922 = vmatprep.subr.mxu0 0.0
    %923 = vmatpush1.msra.mxu0 0.0
    %924 = vmatprep.subr.mxu0 0.0
    %925 = vmatpush1.msra.mxu0 0.0
    %926 = vmatprep.subr.mxu0 0.0
    %927 = vmatpush1.msra.mxu0 0.0
    %928 = vmatprep.subr.mxu0 0.0
    %929 = vmatpush1.msra.mxu0 0.0
    %930 = vmatprep.mubr.f32.mxu0 0.0
    %v931 = vand.u32 %v277, 4294901760
    %932 = vmatmul.mubr.f32.gmra.mrb[0].mxu0 %v931
    %v933 = vpop.f32.mrb[0].mxu0
    %v934 = vadd.f32 %v853, %v933
    %v935 = vpop.f32.mrb[0].mxu0
    %936 = vdwg.mxu0
    %937 = vmatprep.subr.mxu0 0.0
    %v938 = vand.u32 %v266, 4294901760
    %v939 = vsub.f32 %v266, %v938
    %940 = vmatpush1.msra.mxu0 %v939
    %941 = vmatprep.subr.mxu0 0.0
    %v942 = vand.u32 %v286, 4294901760
    %v943 = vsub.f32 %v286, %v942
    %944 = vmatpush1.msra.mxu0 %v943
    %945 = vmatprep.subr.mxu0 0.0
    %946 = vmatpush1.msra.mxu0 0.0
    %947 = vmatprep.subr.mxu0 0.0
    %948 = vmatpush1.msra.mxu0 0.0
    %949 = vmatprep.subr.mxu0 0.0
    %950 = vmatpush1.msra.mxu0 0.0
    %951 = vmatprep.subr.mxu0 0.0
    %952 = vmatpush1.msra.mxu0 0.0
    %953 = vmatprep.subr.mxu0 0.0
    %954 = vmatpush1.msra.mxu0 0.0
    %955 = vmatprep.subr.mxu0 0.0
    %956 = vmatpush1.msra.mxu0 0.0
    %957 = vmatprep.subr.mxu0 0.0
    %958 = vmatpush1.msra.mxu0 0.0
    %959 = vmatprep.subr.mxu0 0.0
    %960 = vmatpush1.msra.mxu0 0.0
    %961 = vmatprep.subr.mxu0 0.0
    %962 = vmatpush1.msra.mxu0 0.0
    %963 = vmatprep.subr.mxu0 0.0
    %964 = vmatpush1.msra.mxu0 0.0
    %965 = vmatprep.subr.mxu0 0.0
    %966 = vmatpush1.msra.mxu0 0.0
    %967 = vmatprep.subr.mxu0 0.0
    %968 = vmatpush1.msra.mxu0 0.0
    %969 = vmatprep.subr.mxu0 0.0
    %970 = vmatpush1.msra.mxu0 0.0
    %971 = vmatprep.subr.mxu0 0.0
    %972 = vmatpush1.msra.mxu0 0.0
    %973 = vmatprep.subr.mxu0 0.0
    %974 = vmatpush1.msra.mxu0 0.0
    %975 = vmatprep.subr.mxu0 0.0
    %976 = vmatpush1.msra.mxu0 0.0
    %977 = vmatprep.subr.mxu0 0.0
    %978 = vmatpush1.msra.mxu0 0.0
    %979 = vmatprep.subr.mxu0 0.0
    %980 = vmatpush1.msra.mxu0 0.0
    %981 = vmatprep.subr.mxu0 0.0
    %982 = vmatpush1.msra.mxu0 0.0
    %983 = vmatprep.subr.mxu0 0.0
    %984 = vmatpush1.msra.mxu0 0.0
    %985 = vmatprep.subr.mxu0 0.0
    %986 = vmatpush1.msra.mxu0 0.0
    %987 = vmatprep.subr.mxu0 0.0
    %988 = vmatpush1.msra.mxu0 0.0
    %989 = vmatprep.subr.mxu0 0.0
    %990 = vmatpush1.msra.mxu0 0.0
    %991 = vmatprep.subr.mxu0 0.0
    %992 = vmatpush1.msra.mxu0 0.0
    %993 = vmatprep.subr.mxu0 0.0
    %994 = vmatpush1.msra.mxu0 0.0
    %995 = vmatprep.subr.mxu0 0.0
    %996 = vmatpush1.msra.mxu0 0.0
    %997 = vmatprep.subr.mxu0 0.0
    %998 = vmatpush1.msra.mxu0 0.0
    %999 = vmatprep.subr.mxu0 0.0
    %1000 = vmatpush1.msra.mxu0 0.0
    %1001 = vmatprep.subr.mxu0 0.0
    %1002 = vmatpush1.msra.mxu0 0.0
    %1003 = vmatprep.subr.mxu0 0.0
    %1004 = vmatpush1.msra.mxu0 0.0
    %1005 = vmatprep.mubr.f32.mxu0 0.0
    %v1006 = vand.u32 %v277, 4294901760
    %v1007 = vsub.f32 %v277, %v1006
    %1008 = vmatmul.mubr.f32.gmra.mrb[0].mxu0 %v1007
    %v1009 = vpop.f32.mrb[0].mxu0
    %v1010 = vadd.f32 %v934, %v1009
    %v1011 = vpop.f32.mrb[0].mxu0
    %1012 = vdwg.mxu0
    %1013 = vmatprep.subr.mxu0 0.0
    %v1014 = vand.u32 %v266, 4294901760
    %1015 = vmatpush1.msra.mxu0 %v1014
    %1016 = vmatprep.subr.mxu0 0.0
    %v1017 = vand.u32 %v286, 4294901760
    %1018 = vmatpush1.msra.mxu0 %v1017
    %1019 = vmatprep.subr.mxu0 0.0
    %1020 = vmatpush1.msra.mxu0 0.0
    %1021 = vmatprep.subr.mxu0 0.0
    %1022 = vmatpush1.msra.mxu0 0.0
    %1023 = vmatprep.subr.mxu0 0.0
    %1024 = vmatpush1.msra.mxu0 0.0
    %1025 = vmatprep.subr.mxu0 0.0
    %1026 = vmatpush1.msra.mxu0 0.0
    %1027 = vmatprep.subr.mxu0 0.0
    %1028 = vmatpush1.msra.mxu0 0.0
    %1029 = vmatprep.subr.mxu0 0.0
    %1030 = vmatpush1.msra.mxu0 0.0
    %1031 = vmatprep.subr.mxu0 0.0
    %1032 = vmatpush1.msra.mxu0 0.0
    %1033 = vmatprep.subr.mxu0 0.0
    %1034 = vmatpush1.msra.mxu0 0.0
    %1035 = vmatprep.subr.mxu0 0.0
    %1036 = vmatpush1.msra.mxu0 0.0
    %1037 = vmatprep.subr.mxu0 0.0
    %1038 = vmatpush1.msra.mxu0 0.0
    %1039 = vmatprep.subr.mxu0 0.0
    %1040 = vmatpush1.msra.mxu0 0.0
    %1041 = vmatprep.subr.mxu0 0.0
    %1042 = vmatpush1.msra.mxu0 0.0
    %1043 = vmatprep.subr.mxu0 0.0
    %1044 = vmatpush1.msra.mxu0 0.0
    %1045 = vmatprep.subr.mxu0 0.0
    %1046 = vmatpush1.msra.mxu0 0.0
    %1047 = vmatprep.subr.mxu0 0.0
    %1048 = vmatpush1.msra.mxu0 0.0
    %1049 = vmatprep.subr.mxu0 0.0
    %1050 = vmatpush1.msra.mxu0 0.0
    %1051 = vmatprep.subr.mxu0 0.0
    %1052 = vmatpush1.msra.mxu0 0.0
    %1053 = vmatprep.subr.mxu0 0.0
    %1054 = vmatpush1.msra.mxu0 0.0
    %1055 = vmatprep.subr.mxu0 0.0
    %1056 = vmatpush1.msra.mxu0 0.0
    %1057 = vmatprep.subr.mxu0 0.0
    %1058 = vmatpush1.msra.mxu0 0.0
    %1059 = vmatprep.subr.mxu0 0.0
    %1060 = vmatpush1.msra.mxu0 0.0
    %1061 = vmatprep.subr.mxu0 0.0
    %1062 = vmatpush1.msra.mxu0 0.0
    %1063 = vmatprep.subr.mxu0 0.0
    %1064 = vmatpush1.msra.mxu0 0.0
    %1065 = vmatprep.subr.mxu0 0.0
    %1066 = vmatpush1.msra.mxu0 0.0
    %1067 = vmatprep.subr.mxu0 0.0
    %1068 = vmatpush1.msra.mxu0 0.0
    %1069 = vmatprep.subr.mxu0 0.0
    %1070 = vmatpush1.msra.mxu0 0.0
    %1071 = vmatprep.subr.mxu0 0.0
    %1072 = vmatpush1.msra.mxu0 0.0
    %1073 = vmatprep.subr.mxu0 0.0
    %1074 = vmatpush1.msra.mxu0 0.0
    %1075 = vmatprep.subr.mxu0 0.0
    %1076 = vmatpush1.msra.mxu0 0.0
    %1077 = vmatprep.subr.mxu0 0.0
    %1078 = vmatpush1.msra.mxu0 0.0
    %1079 = vmatprep.mubr.f32.mxu0 0.0
    %v1080 = vand.u32 %v277, 4294901760
    %v1081 = vsub.f32 %v277, %v1080
    %v1082 = vand.u32 %v1081, 4294901760
    %1083 = vmatmul.mubr.f32.gmra.mrb[0].mxu0 %v1082
    %v1084 = vpop.f32.mrb[0].mxu0
    %v1085 = vadd.f32 %v1010, %v1084
    %v1086 = vpop.f32.mrb[0].mxu0
    %1087 = vdwg.mxu0
    %1088 = vmatprep.subr.mxu0 0.0
    %v1089 = vand.u32 %v266, 4294901760
    %v1090 = vsub.f32 %v266, %v1089
    %v1091 = vand.u32 %v1090, 4294901760
    %1092 = vmatpush1.msra.mxu0 %v1091
    %1093 = vmatprep.subr.mxu0 0.0
    %v1094 = vand.u32 %v286, 4294901760
    %v1095 = vsub.f32 %v286, %v1094
    %v1096 = vand.u32 %v1095, 4294901760
    %1097 = vmatpush1.msra.mxu0 %v1096
    %1098 = vmatprep.subr.mxu0 0.0
    %1099 = vmatpush1.msra.mxu0 0.0
    %1100 = vmatprep.subr.mxu0 0.0
    %1101 = vmatpush1.msra.mxu0 0.0
    %1102 = vmatprep.subr.mxu0 0.0
    %1103 = vmatpush1.msra.mxu0 0.0
    %1104 = vmatprep.subr.mxu0 0.0
    %1105 = vmatpush1.msra.mxu0 0.0
    %1106 = vmatprep.subr.mxu0 0.0
    %1107 = vmatpush1.msra.mxu0 0.0
    %1108 = vmatprep.subr.mxu0 0.0
    %1109 = vmatpush1.msra.mxu0 0.0
    %1110 = vmatprep.subr.mxu0 0.0
    %1111 = vmatpush1.msra.mxu0 0.0
    %1112 = vmatprep.subr.mxu0 0.0
    %1113 = vmatpush1.msra.mxu0 0.0
    %1114 = vmatprep.subr.mxu0 0.0
    %1115 = vmatpush1.msra.mxu0 0.0
    %1116 = vmatprep.subr.mxu0 0.0
    %1117 = vmatpush1.msra.mxu0 0.0
    %1118 = vmatprep.subr.mxu0 0.0
    %1119 = vmatpush1.msra.mxu0 0.0
    %1120 = vmatprep.subr.mxu0 0.0
    %1121 = vmatpush1.msra.mxu0 0.0
    %1122 = vmatprep.subr.mxu0 0.0
    %1123 = vmatpush1.msra.mxu0 0.0
    %1124 = vmatprep.subr.mxu0 0.0
    %1125 = vmatpush1.msra.mxu0 0.0
    %1126 = vmatprep.subr.mxu0 0.0
    %1127 = vmatpush1.msra.mxu0 0.0
    %1128 = vmatprep.subr.mxu0 0.0
    %1129 = vmatpush1.msra.mxu0 0.0
    %1130 = vmatprep.subr.mxu0 0.0
    %1131 = vmatpush1.msra.mxu0 0.0
    %1132 = vmatprep.subr.mxu0 0.0
    %1133 = vmatpush1.msra.mxu0 0.0
    %1134 = vmatprep.subr.mxu0 0.0
    %1135 = vmatpush1.msra.mxu0 0.0
    %1136 = vmatprep.subr.mxu0 0.0
    %1137 = vmatpush1.msra.mxu0 0.0
    %1138 = vmatprep.subr.mxu0 0.0
    %1139 = vmatpush1.msra.mxu0 0.0
    %1140 = vmatprep.subr.mxu0 0.0
    %1141 = vmatpush1.msra.mxu0 0.0
    %1142 = vmatprep.subr.mxu0 0.0
    %1143 = vmatpush1.msra.mxu0 0.0
    %1144 = vmatprep.subr.mxu0 0.0
    %1145 = vmatpush1.msra.mxu0 0.0
    %1146 = vmatprep.subr.mxu0 0.0
    %1147 = vmatpush1.msra.mxu0 0.0
    %1148 = vmatprep.subr.mxu0 0.0
    %1149 = vmatpush1.msra.mxu0 0.0
    %1150 = vmatprep.subr.mxu0 0.0
    %1151 = vmatpush1.msra.mxu0 0.0
    %1152 = vmatprep.subr.mxu0 0.0
    %1153 = vmatpush1.msra.mxu0 0.0
    %1154 = vmatprep.subr.mxu0 0.0
    %1155 = vmatpush1.msra.mxu0 0.0
    %1156 = vmatprep.subr.mxu0 0.0
    %1157 = vmatpush1.msra.mxu0 0.0
    %1158 = vmatprep.mubr.f32.mxu0 0.0
    %v1159 = vand.u32 %v277, 4294901760
    %1160 = vmatmul.mubr.f32.gmra.mrb[0].mxu0 %v1159
    %v1161 = vpop.f32.mrb[0].mxu0
    %v1162 = vadd.f32 %v1085, %v1161
    %v1163 = vpop.f32.mrb[0].mxu0
    %1164 = vdwg.mxu0
    %1165 = vmatprep.subr.mxu0 0.0
    %v1166 = vand.u32 %v266, 4294901760
    %1167 = vmatpush1.msra.mxu0 %v1166
    %1168 = vmatprep.subr.mxu0 0.0
    %v1169 = vand.u32 %v286, 4294901760
    %1170 = vmatpush1.msra.mxu0 %v1169
    %1171 = vmatprep.subr.mxu0 0.0
    %1172 = vmatpush1.msra.mxu0 0.0
    %1173 = vmatprep.subr.mxu0 0.0
    %1174 = vmatpush1.msra.mxu0 0.0
    %1175 = vmatprep.subr.mxu0 0.0
    %1176 = vmatpush1.msra.mxu0 0.0
    %1177 = vmatprep.subr.mxu0 0.0
    %1178 = vmatpush1.msra.mxu0 0.0
    %1179 = vmatprep.subr.mxu0 0.0
    %1180 = vmatpush1.msra.mxu0 0.0
    %1181 = vmatprep.subr.mxu0 0.0
    %1182 = vmatpush1.msra.mxu0 0.0
    %1183 = vmatprep.subr.mxu0 0.0
    %1184 = vmatpush1.msra.mxu0 0.0
    %1185 = vmatprep.subr.mxu0 0.0
    %1186 = vmatpush1.msra.mxu0 0.0
    %1187 = vmatprep.subr.mxu0 0.0
    %1188 = vmatpush1.msra.mxu0 0.0
    %1189 = vmatprep.subr.mxu0 0.0
    %1190 = vmatpush1.msra.mxu0 0.0
    %1191 = vmatprep.subr.mxu0 0.0
    %1192 = vmatpush1.msra.mxu0 0.0
    %1193 = vmatprep.subr.mxu0 0.0
    %1194 = vmatpush1.msra.mxu0 0.0
    %1195 = vmatprep.subr.mxu0 0.0
    %1196 = vmatpush1.msra.mxu0 0.0
    %1197 = vmatprep.subr.mxu0 0.0
    %1198 = vmatpush1.msra.mxu0 0.0
    %1199 = vmatprep.subr.mxu0 0.0
    %1200 = vmatpush1.msra.mxu0 0.0
    %1201 = vmatprep.subr.mxu0 0.0
    %1202 = vmatpush1.msra.mxu0 0.0
    %1203 = vmatprep.subr.mxu0 0.0
    %1204 = vmatpush1.msra.mxu0 0.0
    %1205 = vmatprep.subr.mxu0 0.0
    %1206 = vmatpush1.msra.mxu0 0.0
    %1207 = vmatprep.subr.mxu0 0.0
    %1208 = vmatpush1.msra.mxu0 0.0
    %1209 = vmatprep.subr.mxu0 0.0
    %1210 = vmatpush1.msra.mxu0 0.0
    %1211 = vmatprep.subr.mxu0 0.0
    %1212 = vmatpush1.msra.mxu0 0.0
    %1213 = vmatprep.subr.mxu0 0.0
    %1214 = vmatpush1.msra.mxu0 0.0
    %1215 = vmatprep.subr.mxu0 0.0
    %1216 = vmatpush1.msra.mxu0 0.0
    %1217 = vmatprep.subr.mxu0 0.0
    %1218 = vmatpush1.msra.mxu0 0.0
    %1219 = vmatprep.subr.mxu0 0.0
    %1220 = vmatpush1.msra.mxu0 0.0
    %1221 = vmatprep.subr.mxu0 0.0
    %1222 = vmatpush1.msra.mxu0 0.0
    %1223 = vmatprep.subr.mxu0 0.0
    %1224 = vmatpush1.msra.mxu0 0.0
    %1225 = vmatprep.subr.mxu0 0.0
    %1226 = vmatpush1.msra.mxu0 0.0
    %1227 = vmatprep.subr.mxu0 0.0
    %1228 = vmatpush1.msra.mxu0 0.0
    %1229 = vmatprep.subr.mxu0 0.0
    %1230 = vmatpush1.msra.mxu0 0.0
    %1231 = vmatprep.mubr.f32.mxu0 0.0
    %v1232 = vand.u32 %v277, 4294901760
    %1233 = vmatmul.mubr.f32.gmra.mrb[0].mxu0 %v1232
    %v1234 = vpop.f32.mrb[0].mxu0
    %v1235 = vadd.f32 %v1162, %v1234
    %v1236 = vpop.f32.mrb[0].mxu0
    %1237 = vdwg.mxu0
    %v1238 = vadd.f32 %v775, 1e-08
    %v1239 = vadd.f32 %v777, 1e-08
    %v1240 = vadd.f32 %v1235, 1e-08
    %v1241 = vlaneseq
    %v1242 = vand.u32 %v1241, 127
    %v1243 = vadd.s32 %v1242, 128
    %v1244 = vadd.s32 %v1242, 256
    %vm1245 = vcmp.lt.s32.totalorder %v1242, 300
    %vm1246 = vcmp.lt.s32.totalorder %v1243, 300
    %vm1247 = vcmp.lt.s32.totalorder %v1244, 300
    %v1248 = vsel %vm1245, 1, 0
    %v1249 = vsel %vm1246, 1, 0
    %v1250 = vsel %vm1247, 1, 0
    %vm1251 = vcmp.eq.s32.totalorder %v1248, 1
    %vm1252 = vcmp.eq.s32.totalorder %v1249, 1
    %vm1253 = vcmp.eq.s32.totalorder %v1250, 1
    %v1254 = vsel %vm1251, %v1238, -inf
    %v1255 = vsel %vm1252, %v1239, -inf
    %v1256 = vsel %vm1253, %v1240, -inf
    %vm1257 = vcmask 1043456
    %v1258 = vsel %vm1257, %v1254, -inf
    %v1259 = vsel %vm1257, %v1255, -inf
    %v1260 = vsel %vm1257, %v1256, -inf
    %v1261 = vmax.f32 %v1258, %v1259
    %v1262 = vmax.f32 %v1261, %v1260
    %1263 = vmax.xlane.f32.xlu0 %v1262
    %v1264 = vpop.xlane.xlu0 %1263
    %v1265 = vsub.f32 %v1238, %v1264
    %v1266 = vsub.f32 %v1239, %v1264
    %v1267 = vsub.f32 %v1240, %v1264
    %v1268 = vmul.f32 %v1265, 1.442695
    %v1269 = vpow.pop %v1268
    %v1270 = vmul.f32 %v1266, 1.442695
    %v1271 = vpow.pop %v1270
    %v1272 = vmul.f32 %v1267, 1.442695
    %v1273 = vpow.pop %v1272
    %v1274 = vsel %vm1251, %v1269, 0.0
    %v1275 = vsel %vm1252, %v1271, 0.0
    %v1276 = vsel %vm1253, %v1273, 0.0
    %v1277 = vsel %vm1257, %v1274, 0.0
    %v1278 = vsel %vm1257, %v1275, 0.0
    %v1279 = vadd.f32 %v1277, %v1278
    %v1280 = vsel %vm1257, %v1276, 0.0
    %v1281 = vadd.f32 %v1279, %v1280
    %1282 = vadd.xlane.f32.xlu0 %v1281
    %v1283 = vpop.xlane.xlu0 %1282
    %v1284 = vrcp.pop %v1283
    %v1285 = vmul.f32 %v1283, %v1284
    %v1286 = vsub.f32 2.0, %v1285
    %v1287 = vmul.f32 %v1284, %v1286
    %v1288 = vmul.f32 %v1283, %v1287
    %v1289 = vsub.f32 2.0, %v1288
    %v1290 = vmul.f32 %v1287, %v1289
    %v1291 = vmul.f32 %v1274, %v1290
    %v1292 = vmul.f32 %v1275, %v1290
    %v1293 = vmul.f32 %v1276, %v1290
    %v1296 = vcombine.low %v1291, %v1292
    %1298 = vst [vmem:[#allocation2] sm:$0xff] %v1296
    %1299 = vst [vmem:[#allocation2 + $0x8] sm:$0xf] %v1293
    // Predicated region
    $region22: #{tpu_custom_call.1} parent=1 // pred_check
      _
    $region23: #{tpu_custom_call.1} parent=1 // pred_check_branch
      %1301 = sbr.rel (0) target = $region25
    $region24: #{tpu_custom_call.1} parent=1 // pred_region
      %s1303 = ssub.s32 192, 192
      %1304 = vsyncadd [#allocation3], %s1303
      %s1306 = sshll.u32 [#allocation2], 4
      %s1307 = int_to_ptr.vmem [resolvable:$true] %s1306
      %1309 = dma.vmem_to_hbm [thread:$0]  %s1307, 192, %s5, [#allocation3]
    $region25: #{tpu_custom_call.1} parent=1 // pred_fallthru
      _
    // Predicated region
    $region26: #{tpu_custom_call.1} parent=1 // pred_check
      _
    $region27: #{tpu_custom_call.1} parent=1 // pred_check_branch
      %1311 = sbr.rel (0) target = $region29
    $region28: #{tpu_custom_call.1} parent=1 // pred_region
      %1312 = dma.done [#allocation3], 192
    $region29: #{tpu_custom_call.1} parent=1 // pred_fallthru
      _
    %1313 = vsyncpa [#allocation3], 1

</llo_original>
